<compile_context>
chip_gen: v6e
topology: v6e:2x2x1
jax: 0.10.0
libtpu: 0.0.40
codegen_flags: <defaults>
</compile_context>

<pallas_src>
import math

import jax
import jax.numpy as jnp
from jax.experimental import pallas as pl
from jax.experimental.pallas import tpu as pltpu

_MIB = 1024 * 1024


def _round_up(x: int, m: int) -> int:
    return ((x + m - 1) // m) * m


def _vmem_capacity_bytes() -> int:
    """Best-effort physical VMEM per TensorCore; falls back on device_kind."""
    try:
        return int(pltpu.get_tpu_info().vmem_capacity_bytes)
    except Exception:
        try:
            kind = jax.devices()[0].device_kind.lower()
        except Exception:
            kind = ""
        if "v7" in kind or "tpu7" in kind:
            return 64 * _MIB
        return 128 * _MIB


# --------------------------------------------------------------------------
# Kernels
# --------------------------------------------------------------------------

def _swiglu_streamed_kernel(x_ref, w1v_ref, w1g_ref, b1v_ref, b1g_ref,
                            w2_ref, b2_ref, o_ref, acc_ref):
    # Grid: (M tiles ["parallel"], d_ff tiles ["arbitrary", innermost]).
    # x_ref (tm, d_model) bf16, w1{v,g}_ref (d_model, tf) bf16,
    # b1{v,g}_ref (1, tf) f32, w2_ref (tf, d_model) bf16, b2_ref (1, d_model) f32,
    # o_ref (tm, d_model), acc_ref (tm, d_model) f32 VMEM accumulator.
    f = pl.program_id(1)

    x = x_ref[...]
    value = jnp.dot(x, w1v_ref[...],
                    preferred_element_type=jnp.float32) + b1v_ref[...]
    gate = jnp.dot(x, w1g_ref[...],
                   preferred_element_type=jnp.float32) + b1g_ref[...]
    act = (value * jnp.maximum(gate, 0.0)).astype(w2_ref.dtype)
    part = jnp.dot(act, w2_ref[...], preferred_element_type=jnp.float32)

    @pl.when(f == 0)
    def _():
        acc_ref[...] = part          # assign (saves a zero-fill store + add)

    @pl.when(f != 0)
    def _():
        acc_ref[...] += part

    @pl.when(f == pl.num_programs(1) - 1)
    def _():
        o_ref[...] = (acc_ref[...] + b2_ref[...]).astype(o_ref.dtype)


def _swiglu_resident_kernel(x_ref, w1v_ref, w1g_ref, b1v_ref, b1g_ref,
                            w2_ref, b2_ref, o_ref):
    # Weights-resident path: grid is 1-D over M tiles; full-width weights with
    # constant index_maps stay in VMEM, no accumulator / f-loop needed.
    x = x_ref[...]
    value = jnp.dot(x, w1v_ref[...],
                    preferred_element_type=jnp.float32) + b1v_ref[...]
    gate = jnp.dot(x, w1g_ref[...],
                   preferred_element_type=jnp.float32) + b1g_ref[...]
    act = (value * jnp.maximum(gate, 0.0)).astype(w2_ref.dtype)
    o_ref[...] = (jnp.dot(act, w2_ref[...], preferred_element_type=jnp.float32)
                  + b2_ref[...]).astype(o_ref.dtype)


# --------------------------------------------------------------------------
# Wrapper
# --------------------------------------------------------------------------

def swiglu_ffn(x, w1, b1, w2, b2, *, tm=None, tf=None,
               compute_dtype=jnp.bfloat16):
    """x: [b, s, d_model] -> [b, s, d_model]."""
    b, s, d_model = x.shape
    d_ff = w2.shape[0]
    assert w1.shape == (d_model, 2 * d_ff)
    assert b1.shape == (2 * d_ff,)
    assert w2.shape == (d_ff, d_model)
    assert b2.shape == (d_model,)

    M = b * s
    out_dtype = x.dtype
    itemsize = jnp.dtype(compute_dtype).itemsize

    vmem_cap = _vmem_capacity_bytes()
    small_vmem = vmem_cap <= 64 * _MIB        # v7x-class: 64 MiB VMEM, 2 TCs/chip

    # --- tile / path selection --------------------------------------------
    # Resident path when all bf16 weights fit comfortably in VMEM.
    weight_bytes = 3 * d_model * d_ff * itemsize      # w1 (2*d*d_ff) + w2 (d_ff*d)
    resident = weight_bytes <= int(vmem_cap * 0.30)

    if resident:
        tm = 256 if tm is None else tm
        # Full-width feature tile; needs lane alignment unless it is the full dim.
        tf = d_ff if d_ff % 128 == 0 else _round_up(d_ff, 128)
    else:
        if tm is None:
            tm = 512 if small_vmem else 1024           # FLOPs/weight-byte == tm
        if tf is None:
            tf = 256 if small_vmem else 512
        tf = min(tf, _round_up(d_ff, 128))

    # Row tile: multiple of 16 (bf16 sublane packing), no bigger than padded M.
    tm = min(tm, _round_up(M, 16))
    # v7x has 2 TensorCores: make sure the "parallel" M axis has >= 2 blocks
    # whenever M permits, so both cores get work.
    if small_vmem and M > 16 and _round_up(M, tm) // tm < 2:
        tm = _round_up(-(-M // 2), 16)
    M_pad = _round_up(M, tm)
    n_m = M_pad // tm

    d_ff_pad = _round_up(d_ff, tf)
    n_f = d_ff_pad // tf

    # --- input prep (plain XLA; weight casts are no-ops if already bf16) ----
    x2 = x.reshape(M, d_model).astype(compute_dtype)
    if M_pad != M:
        x2 = jnp.pad(x2, ((0, M_pad - M), (0, 0)))
    b2_2d = b2.reshape(1, d_model).astype(jnp.float32)

    shared_w1 = (d_ff % tf == 0)
    if shared_w1:
        # No value/gate split copies: pass w1/b1 twice, address the halves via
        # a block-index offset in the index_maps.
        w1v = w1g = w1.astype(compute_dtype)
        b1v = b1g = b1.reshape(1, 2 * d_ff).astype(jnp.float32)
        w2c = w2.astype(compute_dtype)
        gate_off = d_ff // tf
    else:
        # d_ff not a multiple of the feature tile: pad each half with zeros
        # (padded columns contribute exactly 0 through zero w2 rows).
        pad_f = d_ff_pad - d_ff
        w1v = jnp.pad(w1[:, :d_ff].astype(compute_dtype), ((0, 0), (0, pad_f)))
        w1g = jnp.pad(w1[:, d_ff:].astype(compute_dtype), ((0, 0), (0, pad_f)))
        b1v = jnp.pad(b1[:d_ff].reshape(1, d_ff).astype(jnp.float32),
                      ((0, 0), (0, pad_f)))
        b1g = jnp.pad(b1[d_ff:].reshape(1, d_ff).astype(jnp.float32),
                      ((0, 0), (0, pad_f)))
        w2c = jnp.pad(w2.astype(compute_dtype), ((0, pad_f), (0, 0)))
        gate_off = 0

    # --- VMEM budget & cost estimate ----------------------------------------
    vmem_limit = min(int(vmem_cap * 0.85), vmem_cap - 8 * _MIB)

    w_bytes_once = (2 * d_model * d_ff_pad + d_ff_pad * d_model) * itemsize
    b_bytes_once = (2 * d_ff_pad + d_model) * 4
    weight_streams = 1 if resident else n_m     # weights re-read per M tile
    bytes_accessed = (x2.size * itemsize
                      + M_pad * d_model * jnp.dtype(out_dtype).itemsize
                      + weight_streams * (w_bytes_once + b_bytes_once))
    cost = pl.CostEstimate(
        flops=6 * M_pad * d_model * d_ff_pad,
        transcendentals=0,
        bytes_accessed=int(bytes_accessed))

    # --- pallas_call ---------------------------------------------------------
    if resident:
        grid = (n_m,)
        in_specs = [
            pl.BlockSpec((tm, d_model), lambda i: (i, 0)),            # x rows
            pl.BlockSpec((d_model, tf), lambda i: (0, 0)),            # w1 value half
            pl.BlockSpec((d_model, tf), lambda i: (0, gate_off)),     # w1 gate half
            pl.BlockSpec((1, tf), lambda i: (0, 0)),                  # b1 value half
            pl.BlockSpec((1, tf), lambda i: (0, gate_off)),           # b1 gate half
            pl.BlockSpec((tf, d_model), lambda i: (0, 0)),            # w2
            pl.BlockSpec((1, d_model), lambda i: (0, 0)),             # b2
        ]
        out_spec = pl.BlockSpec((tm, d_model), lambda i: (i, 0))
        kernel = _swiglu_resident_kernel
        scratch = []
        dims = ("parallel",)
    else:
        grid = (n_m, n_f)
        in_specs = [
            pl.BlockSpec((tm, d_model), lambda i, f: (i, 0)),             # x rows
            pl.BlockSpec((d_model, tf), lambda i, f: (0, f)),             # w1 value
            pl.BlockSpec((d_model, tf), lambda i, f: (0, f + gate_off)),  # w1 gate
            pl.BlockSpec((1, tf), lambda i, f: (0, f)),                   # b1 value
            pl.BlockSpec((1, tf), lambda i, f: (0, f + gate_off)),        # b1 gate
            pl.BlockSpec((tf, d_model), lambda i, f: (f, 0)),             # w2 rows
            pl.BlockSpec((1, d_model), lambda i, f: (0, 0)),              # b2
        ]
        out_spec = pl.BlockSpec((tm, d_model), lambda i, f: (i, 0))
        kernel = _swiglu_streamed_kernel
        scratch = [pltpu.VMEM((tm, d_model), jnp.float32)]
        dims = ("parallel", "arbitrary")

    out2 = pl.pallas_call(
        kernel,
        out_shape=jax.ShapeDtypeStruct((M_pad, d_model), out_dtype),
        grid_spec=pltpu.PrefetchScalarGridSpec(
            num_scalar_prefetch=0,
            grid=grid,
            in_specs=in_specs,
            out_specs=out_spec,
            scratch_shapes=scratch),
        compiler_params=pltpu.CompilerParams(
            dimension_semantics=dims,
            vmem_limit_bytes=vmem_limit),
        cost_estimate=cost,
    )(x2, w1v, w1g, b1v, b1g, w2c, b2_2d)

    if M_pad != M:
        out2 = out2[:M]
    return out2.reshape(b, s, d_model)


# --------------------------------------------------------------------------
# Params / reference / self-test
# --------------------------------------------------------------------------

def init_params(key, d_model, dtype=jnp.float32):
    d_ff_raw = d_model * 8 / 3
    d_ff = int(math.ceil(d_ff_raw / 64) * 64)
    k1, k2, k3, k4 = jax.random.split(key, 4)
    # nn.init.trunc_normal_ default: mean=0, std=1, a=-2, b=2
    w1 = jax.random.truncated_normal(k1, -2.0, 2.0, (d_model, 2 * d_ff)).astype(dtype)
    w2 = jax.random.truncated_normal(k2, -2.0, 2.0, (d_ff, d_model)).astype(dtype)
    # Module initializes biases to zero; use nonzero values here so the
    # self-test actually exercises the b1/b2 broadcast-add path.
    b1 = (0.1 * jax.random.normal(k3, (2 * d_ff,))).astype(dtype)
    b2 = (0.1 * jax.random.normal(k4, (d_model,))).astype(dtype)
    return w1, b1, w2, b2


def reference(x, w1, b1, w2, b2, compute_dtype=jnp.bfloat16):
    """Pure-JAX reference with matching bf16-matmul / f32-accumulate numerics."""
    b, s, d_model = x.shape
    d_ff = w2.shape[0]
    xc = x.reshape(-1, d_model).astype(compute_dtype)
    h = jnp.dot(xc, w1.astype(compute_dtype),
                preferred_element_type=jnp.float32) + b1.astype(jnp.float32)
    value, gate = h[:, :d_ff], h[:, d_ff:]
    act = (value * jnp.maximum(gate, 0.0)).astype(compute_dtype)
    out = jnp.dot(act, w2.astype(compute_dtype),
                  preferred_element_type=jnp.float32) + b2.astype(jnp.float32)
    return out.reshape(b, s, d_model).astype(x.dtype)


if __name__ == "__main__":
    key = jax.random.PRNGKey(0)
    kx, kp = jax.random.split(key)

    # Lane-dense d_model (multiple of 128); d_ff = ceil(128*8/3 / 64)*64 = 384.
    batch, seq, d_model = 2, 8, 128
    x = jax.random.normal(kx, (batch, seq, d_model), dtype=jnp.float32)
    w1, b1, w2, b2 = init_params(kp, d_model)

    out = swiglu_ffn(x, w1, b1, w2, b2)
    out = jax.block_until_ready(out)

    ref = reference(x, w1, b1, w2, b2)
    assert out.shape == (batch, seq, d_model)
    assert jnp.allclose(out, ref, atol=2e-2, rtol=2e-2), "mismatch vs JAX reference"

    print("KERNEL_OK")
</pallas_src>

<mosaic_0001>
module attributes {stable_mosaic.version = 11 : i64} {
  func.func @_swiglu_resident_kernel(%arg0: i32, %arg1: memref<16x128xbf16, #tpu.memory_space<vmem>>, %arg2: memref<128x384xbf16, #tpu.memory_space<vmem>>, %arg3: memref<128x384xbf16, #tpu.memory_space<vmem>>, %arg4: memref<1x384xf32, #tpu.memory_space<vmem>>, %arg5: memref<1x384xf32, #tpu.memory_space<vmem>>, %arg6: memref<384x128xbf16, #tpu.memory_space<vmem>>, %arg7: memref<1x128xf32, #tpu.memory_space<vmem>>, %arg8: memref<16x128xf32, #tpu.memory_space<vmem>>) attributes {dimension_semantics = [#tpu.dimension_semantics<parallel>], iteration_bounds = array<i64: 1>, scalar_prefetch = 0 : i64, scratch_operands = 0 : i64, tpu.core_type = #tpu.core_type<tc>, window_params = [{transform_indices = @transform_0, window_bounds = array<i64: 16, 128>}, {transform_indices = @transform_1, window_bounds = array<i64: 128, 384>}, {transform_indices = @transform_2, window_bounds = array<i64: 128, 384>}, {transform_indices = @transform_3, window_bounds = array<i64: 1, 384>}, {transform_indices = @transform_4, window_bounds = array<i64: 1, 384>}, {pipeline_mode = #tpu.pipeline_mode<synchronous>, transform_indices = @transform_5, window_bounds = array<i64: 384, 128>}, {pipeline_mode = #tpu.pipeline_mode<synchronous>, transform_indices = @transform_6, window_bounds = array<i64: 1, 128>}, {transform_indices = @transform_7, window_bounds = array<i64: 16, 128>}]} {
    %c0 = arith.constant 0 : index
    %c0_0 = arith.constant 0 : index
    %0 = vector.load %arg1[%c0, %c0_0] : memref<16x128xbf16, #tpu.memory_space<vmem>>, vector<16x128xbf16>
    %c0_1 = arith.constant 0 : index
    %c0_2 = arith.constant 0 : index
    %1 = vector.load %arg2[%c0_1, %c0_2] : memref<128x384xbf16, #tpu.memory_space<vmem>>, vector<128x384xbf16>
    %cst = arith.constant dense<0.000000e+00> : vector<16x384xf32>
    %2 = tpu.matmul %0, %1, %cst {dimension_numbers = #tpu.dot_dimension_numbers<[1], [0], [0], [1], [0, 0, 1, 1], [], []>} : vector<16x128xbf16>, vector<128x384xbf16>, vector<16x384xf32> -> vector<16x384xf32>
    %c0_3 = arith.constant 0 : index
    %c0_4 = arith.constant 0 : index
    %3 = vector.load %arg4[%c0_3, %c0_4] : memref<1x384xf32, #tpu.memory_space<vmem>>, vector<1x384xf32>
    %4 = vector.broadcast %3 : vector<1x384xf32> to vector<16x384xf32>
    %5 = arith.addf %2, %4 : vector<16x384xf32>
    %c0_5 = arith.constant 0 : index
    %c0_6 = arith.constant 0 : index
    %6 = vector.load %arg3[%c0_5, %c0_6] : memref<128x384xbf16, #tpu.memory_space<vmem>>, vector<128x384xbf16>
    %cst_7 = arith.constant dense<0.000000e+00> : vector<16x384xf32>
    %7 = tpu.matmul %0, %6, %cst_7 {dimension_numbers = #tpu.dot_dimension_numbers<[1], [0], [0], [1], [0, 0, 1, 1], [], []>} : vector<16x128xbf16>, vector<128x384xbf16>, vector<16x384xf32> -> vector<16x384xf32>
    %c0_8 = arith.constant 0 : index
    %c0_9 = arith.constant 0 : index
    %8 = vector.load %arg5[%c0_8, %c0_9] : memref<1x384xf32, #tpu.memory_space<vmem>>, vector<1x384xf32>
    %9 = vector.broadcast %8 : vector<1x384xf32> to vector<16x384xf32>
    %10 = arith.addf %7, %9 : vector<16x384xf32>
    %cst_10 = arith.constant 0.000000e+00 : f32
    %11 = vector.broadcast %cst_10 : f32 to vector<16x384xf32>
    %12 = arith.maximumf %10, %11 : vector<16x384xf32>
    %13 = arith.mulf %5, %12 : vector<16x384xf32>
    %14 = arith.truncf %13 : vector<16x384xf32> to vector<16x384xbf16>
    %c0_11 = arith.constant 0 : index
    %c0_12 = arith.constant 0 : index
    %15 = vector.load %arg6[%c0_11, %c0_12] : memref<384x128xbf16, #tpu.memory_space<vmem>>, vector<384x128xbf16>
    %cst_13 = arith.constant dense<0.000000e+00> : vector<16x128xf32>
    %16 = tpu.matmul %14, %15, %cst_13 {dimension_numbers = #tpu.dot_dimension_numbers<[1], [0], [0], [1], [0, 0, 1, 1], [], []>} : vector<16x384xbf16>, vector<384x128xbf16>, vector<16x128xf32> -> vector<16x128xf32>
    %c0_14 = arith.constant 0 : index
    %c0_15 = arith.constant 0 : index
    %17 = vector.load %arg7[%c0_14, %c0_15] : memref<1x128xf32, #tpu.memory_space<vmem>>, vector<1x128xf32>
    %18 = vector.broadcast %17 : vector<1x128xf32> to vector<16x128xf32>
    %19 = arith.addf %16, %18 : vector<16x128xf32>
    %c0_16 = arith.constant 0 : index
    %c0_17 = arith.constant 0 : index
    %20 = vector.load %arg8[%c0_16, %c0_17] : memref<16x128xf32, #tpu.memory_space<vmem>>, vector<16x128xf32>
    tpu.vector_store %arg8[%c0_16, %c0_17], %19 {strides = array<i32>} : memref<16x128xf32, #tpu.memory_space<vmem>>, vector<16x128xf32>,
    return
  }
  func.func @transform_0(%arg0: i32) -> (i32, i32) {
    %c0_i32 = arith.constant 0 : i32
    %c0_i32_0 = arith.constant 0 : i32
    return %arg0, %c0_i32 : i32, i32
  }
  func.func @transform_1(%arg0: i32) -> (i32, i32) {
    %c0_i32 = arith.constant 0 : i32
    %c0_i32_0 = arith.constant 0 : i32
    %c0_i32_1 = arith.constant 0 : i32
    return %c0_i32, %c0_i32_0 : i32, i32
  }
  func.func @transform_2(%arg0: i32) -> (i32, i32) {
    %c0_i32 = arith.constant 0 : i32
    %c1_i32 = arith.constant 1 : i32
    %c0_i32_0 = arith.constant 0 : i32
    return %c0_i32, %c1_i32 : i32, i32
  }
  func.func @transform_3(%arg0: i32) -> (i32, i32) {
    %c0_i32 = arith.constant 0 : i32
    %c0_i32_0 = arith.constant 0 : i32
    %c0_i32_1 = arith.constant 0 : i32
    return %c0_i32, %c0_i32_0 : i32, i32
  }
  func.func @transform_4(%arg0: i32) -> (i32, i32) {
    %c0_i32 = arith.constant 0 : i32
    %c1_i32 = arith.constant 1 : i32
    %c0_i32_0 = arith.constant 0 : i32
    return %c0_i32, %c1_i32 : i32, i32
  }
  func.func @transform_5(%arg0: i32) -> (i32, i32) {
    %c0_i32 = arith.constant 0 : i32
    %c0_i32_0 = arith.constant 0 : i32
    %c0_i32_1 = arith.constant 0 : i32
    return %c0_i32, %c0_i32_0 : i32, i32
  }
  func.func @transform_6(%arg0: i32) -> (i32, i32) {
    %c0_i32 = arith.constant 0 : i32
    %c0_i32_0 = arith.constant 0 : i32
    %c0_i32_1 = arith.constant 0 : i32
    return %c0_i32, %c0_i32_0 : i32, i32
  }
  func.func @transform_7(%arg0: i32) -> (i32, i32) {
    %c0_i32 = arith.constant 0 : i32
    %c0_i32_0 = arith.constant 0 : i32
    return %arg0, %c0_i32 : i32, i32
  }
}

</mosaic_0001>

<llo_original>
// kernel: tpu_custom_call.1
$region0: #{tpu_custom_call.1}
  #allocation0 [shape = 'u32[]', space=smem, size = 0x4, offset = 0x4, fixed_abs, tag = 'smem constant byte address 0x4 - core index']
  #allocation1 [shape = 'u32[144,128]{1,0:T(1,128)}', space=vmem, size = 0x12000, scoped, tag = 'internal scratch']
  %s0 = inlined_call_operand.hbm [shape: bf16[16,128], index: 0, kind: input, shape index: {}]
  %s1 = inlined_call_operand.hbm [shape: bf16[128,768], index: 1, kind: input, shape index: {}]
  %s2 = inlined_call_operand.hbm [shape: bf16[128,768], index: 2, kind: input, shape index: {}]
  %s3 = inlined_call_operand.hbm [shape: f32[1,768], index: 3, kind: input, shape index: {}]
  %s4 = inlined_call_operand.vmem [shape: f32[1,768], index: 4, kind: input, shape index: {}]
  %s5 = inlined_call_operand.hbm [shape: bf16[384,128], index: 5, kind: input, shape index: {}]
  %s6 = inlined_call_operand.vmem [shape: f32[1,128], index: 6, kind: input, shape index: {}]
  %s7 = inlined_call_operand.hbm [shape: f32[16,128], index: 7, kind: output, shape index: {}]
  %s8 = sld [smem:[#allocation0]]
  $region58: #{tpu_custom_call.1} parent=0
    _
  %s10 = ssub.s32 1, %s8
  %s11 = scalar_select 0, %s10, %s8
  $region1: #{tpu_custom_call.1} parent=0
    #allocation2 [shape = 'u8[4096]{0}', space=vmem, size = 0x1000, scoped, tag = 'input window, operand 0, single buffered']
    #allocation3 [shape = 's32[1]{0}', space=sflag, size = 0x4, scoped, tag = 'scoped memory for tpu_custom_call.1']
    #allocation4 [shape = 's32[1]{0}', space=sflag, size = 0x4, scoped, tag = 'scoped memory for tpu_custom_call.1']
    #allocation5 [shape = 'u8[98304]{0}', space=vmem, size = 0x18000, scoped, tag = 'input window, operand 1, single buffered']
    #allocation6 [shape = 's32[1]{0}', space=sflag, size = 0x4, scoped, tag = 'scoped memory for tpu_custom_call.1']
    #allocation7 [shape = 'u8[98304]{0}', space=vmem, size = 0x18000, scoped, tag = 'input window, operand 2, single buffered']
    #allocation8 [shape = 'u8[1536]{0}', space=vmem, size = 0x800, scoped, tag = 'input window, operand 3, single buffered']
    #allocation9 [shape = 's32[1]{0}', space=sflag, size = 0x4, scoped, tag = 'scoped memory for tpu_custom_call.1']
    #allocation10 [shape = 'u8[98304]{0}', space=vmem, size = 0x18000, scoped, tag = 'input window, operand 5, single buffered']
    #allocation11 [shape = 'u8[8192]{0}', space=vmem, size = 0x2000, scoped, tag = 'output window, operand 0, single buffered']
    %12 = vsyncpa [#allocation3], 0
    %13 = vsyncpa [#allocation6], 0
    %14 = vsyncpa [#allocation9], 0
    %15 = vsyncpa [#allocation4], 0
    // Predicated region
    $region2: #{tpu_custom_call.1} parent=1 // pred_check
      _
    $region3: #{tpu_custom_call.1} parent=1 // pred_check_branch
      %17 = sbr.rel (0) target = $region5
    $region4: #{tpu_custom_call.1} parent=1 // pred_region
      %s19 = ssub.s32 128, 128
      %20 = vsyncadd [#allocation3], %s19
      %s21 = sshll.u32 [#allocation2], 4
      %s22 = int_to_ptr.vmem [resolvable:$true] %s21
      %27 = dma.hbm_to_vmem [thread:$0]  %s0, 128, %s22, [#allocation3], 64, 64, 4
    $region5: #{tpu_custom_call.1} parent=1 // pred_fallthru
      _
    // Predicated region
    $region6: #{tpu_custom_call.1} parent=1 // pred_check
      _
    $region7: #{tpu_custom_call.1} parent=1 // pred_check_branch
      %29 = sbr.rel (0) target = $region9
    $region8: #{tpu_custom_call.1} parent=1 // pred_region
      %s31 = ssub.s32 3072, 3072
      %32 = vsyncadd [#allocation6], %s31
      %s33 = sshll.u32 [#allocation5], 4
      %s34 = int_to_ptr.vmem [resolvable:$true] %s33
      %39 = dma.hbm_to_vmem [thread:$0]  %s1, 3072, %s34, [#allocation6], 384, 192, 12
    $region9: #{tpu_custom_call.1} parent=1 // pred_fallthru
      _
    // Predicated region
    $region10: #{tpu_custom_call.1} parent=1 // pred_check
      _
    $region11: #{tpu_custom_call.1} parent=1 // pred_check_branch
      %41 = sbr.rel (0) target = $region13
    $region12: #{tpu_custom_call.1} parent=1 // pred_region
      %s43 = ssub.s32 3072, 3072
      %44 = vsyncadd [#allocation6], %s43
      %s45 = scalar_lea.hbm %s2, 192
      %s46 = sshll.u32 [#allocation7], 4
      %s47 = int_to_ptr.vmem [resolvable:$true] %s46
      %52 = dma.hbm_to_vmem [thread:$0]  %s45, 3072, %s47, [#allocation6], 384, 192, 12
    $region13: #{tpu_custom_call.1} parent=1 // pred_fallthru
      _
    // Predicated region
    $region14: #{tpu_custom_call.1} parent=1 // pred_check
      _
    $region15: #{tpu_custom_call.1} parent=1 // pred_check_branch
      %54 = sbr.rel (0) target = $region17
    $region16: #{tpu_custom_call.1} parent=1 // pred_region
      %s56 = ssub.s32 48, 48
      %57 = vsyncadd [#allocation9], %s56
      %s59 = sshll.u32 [#allocation8], 4
      %s60 = int_to_ptr.vmem [resolvable:$true] %s59
      %62 = dma.hbm_to_vmem [thread:$0]  %s3, 48, %s60, [#allocation9]
    $region17: #{tpu_custom_call.1} parent=1 // pred_fallthru
      _
    // Predicated region
    $region18: #{tpu_custom_call.1} parent=1 // pred_check
      _
    $region19: #{tpu_custom_call.1} parent=1 // pred_check_branch
      %64 = sbr.rel (0) target = $region21
    $region20: #{tpu_custom_call.1} parent=1 // pred_region
      %s65 = scalar_lea.vmem %s4, 3
    $region21: #{tpu_custom_call.1} parent=1 // pred_fallthru
      _
    // Predicated region
    $region22: #{tpu_custom_call.1} parent=1 // pred_check
      _
    $region23: #{tpu_custom_call.1} parent=1 // pred_check_branch
      %67 = sbr.rel (0) target = $region25
    $region24: #{tpu_custom_call.1} parent=1 // pred_region
      %s69 = ssub.s32 3072, 3072
      %70 = vsyncadd [#allocation9], %s69
      %s71 = sshll.u32 [#allocation10], 4
      %s72 = int_to_ptr.vmem [resolvable:$true] %s71
      %77 = dma.hbm_to_vmem [thread:$0]  %s5, 3072, %s72, [#allocation9], 64, 64, 4
    $region25: #{tpu_custom_call.1} parent=1 // pred_fallthru
      _
    // Predicated region
    $region26: #{tpu_custom_call.1} parent=1 // pred_check
      _
    $region27: #{tpu_custom_call.1} parent=1 // pred_check_branch
      %79 = sbr.rel (0) target = $region29
    $region28: #{tpu_custom_call.1} parent=1 // pred_region
      _
    $region29: #{tpu_custom_call.1} parent=1 // pred_fallthru
      _
    // Predicated region
    $region30: #{tpu_custom_call.1} parent=1 // pred_check
      _
    $region31: #{tpu_custom_call.1} parent=1 // pred_check_branch
      %81 = sbr.rel (0) target = $region33
    $region32: #{tpu_custom_call.1} parent=1 // pred_region
      %82 = dma.done [#allocation3], 128
    $region33: #{tpu_custom_call.1} parent=1 // pred_fallthru
      _
    // Predicated region
    $region34: #{tpu_custom_call.1} parent=1 // pred_check
      _
    $region35: #{tpu_custom_call.1} parent=1 // pred_check_branch
      %84 = sbr.rel (0) target = $region37
    $region36: #{tpu_custom_call.1} parent=1 // pred_region
      %85 = dma.done [#allocation6], 3072
    $region37: #{tpu_custom_call.1} parent=1 // pred_fallthru
      _
    // Predicated region
    $region38: #{tpu_custom_call.1} parent=1 // pred_check
      _
    $region39: #{tpu_custom_call.1} parent=1 // pred_check_branch
      %87 = sbr.rel (0) target = $region41
    $region40: #{tpu_custom_call.1} parent=1 // pred_region
      %88 = dma.done [#allocation6], 3072
    $region41: #{tpu_custom_call.1} parent=1 // pred_fallthru
      _
    // Predicated region
    $region42: #{tpu_custom_call.1} parent=1 // pred_check
      _
    $region43: #{tpu_custom_call.1} parent=1 // pred_check_branch
      %90 = sbr.rel (0) target = $region45
    $region44: #{tpu_custom_call.1} parent=1 // pred_region
      %91 = dma.done [#allocation9], 48
    $region45: #{tpu_custom_call.1} parent=1 // pred_fallthru
      _
    // Predicated region
    $region46: #{tpu_custom_call.1} parent=1 // pred_check
      _
    $region47: #{tpu_custom_call.1} parent=1 // pred_check_branch
      %93 = sbr.rel (0) target = $region49
    $region48: #{tpu_custom_call.1} parent=1 // pred_region
      %94 = dma.done [#allocation9], 3072
    $region49: #{tpu_custom_call.1} parent=1 // pred_fallthru
      _
    %s95 = scalar_lea.vmem %s4, 3
    %s96 = scalar_lea.vmem %s4, 3
    %v98 = vld [vmem:[#allocation2] sm:$0xf]
    %v99 = vld [vmem:[#allocation2 + $0x4] sm:$0xf]
    %v100 = vld [vmem:[#allocation5] sm:$0xff]
    %v101 = vld [vmem:[#allocation5 + $0x8] sm:$0xf]
    %v102 = vld [vmem:[#allocation5 + $0xc] sm:$0xff]
    %v103 = vld [vmem:[#allocation5 + $0x14] sm:$0xf]
    %v104 = vld [vmem:[#allocation5 + $0x18] sm:$0xff]
    %v105 = vld [vmem:[#allocation5 + $0x20] sm:$0xf]
    %v106 = vld [vmem:[#allocation5 + $0x24] sm:$0xff]
    %v107 = vld [vmem:[#allocation5 + $0x2c] sm:$0xf]
    %v108 = vld [vmem:[#allocation5 + $0x30] sm:$0xff]
    %v109 = vld [vmem:[#allocation5 + $0x38] sm:$0xf]
    %v110 = vld [vmem:[#allocation5 + $0x3c] sm:$0xff]
    %v111 = vld [vmem:[#allocation5 + $0x44] sm:$0xf]
    %v112 = vld [vmem:[#allocation5 + $0x48] sm:$0xff]
    %v113 = vld [vmem:[#allocation5 + $0x50] sm:$0xf]
    %v114 = vld [vmem:[#allocation5 + $0x54] sm:$0xff]
    %v115 = vld [vmem:[#allocation5 + $0x5c] sm:$0xf]
    %v116 = vld [vmem:[#allocation5 + $0x60] sm:$0xff]
    %v117 = vld [vmem:[#allocation5 + $0x68] sm:$0xf]
    %v118 = vld [vmem:[#allocation5 + $0x6c] sm:$0xff]
    %v119 = vld [vmem:[#allocation5 + $0x74] sm:$0xf]
    %v120 = vld [vmem:[#allocation5 + $0x78] sm:$0xff]
    %v121 = vld [vmem:[#allocation5 + $0x80] sm:$0xf]
    %v122 = vld [vmem:[#allocation5 + $0x84] sm:$0xff]
    %v123 = vld [vmem:[#allocation5 + $0x8c] sm:$0xf]
    %v124 = vld [vmem:[#allocation5 + $0x90] sm:$0xff]
    %v125 = vld [vmem:[#allocation5 + $0x98] sm:$0xf]
    %v126 = vld [vmem:[#allocation5 + $0x9c] sm:$0xff]
    %v127 = vld [vmem:[#allocation5 + $0xa4] sm:$0xf]
    %v128 = vld [vmem:[#allocation5 + $0xa8] sm:$0xff]
    %v129 = vld [vmem:[#allocation5 + $0xb0] sm:$0xf]
    %v130 = vld [vmem:[#allocation5 + $0xb4] sm:$0xff]
    %v131 = vld [vmem:[#allocation5 + $0xbc] sm:$0xf]
    %v132 = vld [vmem:[#allocation8] sm:$0x7]
    %v134 = vlaneseq
    %v135 = vshrl.u32 %v134, 7
    %v136 = vsub.s32 0, %v135
    %v137 = vrot.slane %v132, %v136
    %v138 = vlaneseq
    %v139 = vshrl.u32 %v138, 7
    %v140 = vsub.s32 1, %v139
    %v141 = vrot.slane %v132, %v140
    %v142 = vlaneseq
    %v143 = vshrl.u32 %v142, 7
    %v144 = vsub.s32 2, %v143
    %v145 = vrot.slane %v132, %v144
    %v151 = vunpack.c.l.b16 %v98
    %v152 = vunpack.c.l.b16 %v99
    %v153 = vpack.c.b16 %v152, %v151
    %v187 = vunpack.c.l.b16 %v100
    %v188 = vunpack.c.h.b16 %v100
    %v189 = vunpack.c.l.b16 %v101
    %v190 = vunpack.c.l.b16 %v102
    %v191 = vunpack.c.h.b16 %v102
    %v192 = vunpack.c.l.b16 %v103
    %v193 = vunpack.c.l.b16 %v104
    %v194 = vunpack.c.h.b16 %v104
    %v195 = vunpack.c.l.b16 %v105
    %v196 = vunpack.c.l.b16 %v106
    %v197 = vunpack.c.h.b16 %v106
    %v198 = vunpack.c.l.b16 %v107
    %v199 = vunpack.c.l.b16 %v108
    %v200 = vunpack.c.h.b16 %v108
    %v201 = vunpack.c.l.b16 %v109
    %v202 = vunpack.c.l.b16 %v110
    %v203 = vunpack.c.h.b16 %v110
    %v204 = vunpack.c.l.b16 %v111
    %v205 = vunpack.c.l.b16 %v112
    %v206 = vunpack.c.h.b16 %v112
    %v207 = vunpack.c.l.b16 %v113
    %v208 = vunpack.c.l.b16 %v114
    %v209 = vunpack.c.h.b16 %v114
    %v210 = vunpack.c.l.b16 %v115
    %v211 = vunpack.c.l.b16 %v116
    %v212 = vunpack.c.h.b16 %v116
    %v213 = vunpack.c.l.b16 %v117
    %v214 = vunpack.c.l.b16 %v118
    %v215 = vunpack.c.h.b16 %v118
    %v216 = vunpack.c.l.b16 %v119
    %v217 = vunpack.c.l.b16 %v120
    %v218 = vunpack.c.h.b16 %v120
    %v219 = vunpack.c.l.b16 %v121
    %v220 = vunpack.c.l.b16 %v122
    %v221 = vunpack.c.h.b16 %v122
    %v222 = vunpack.c.l.b16 %v123
    %v223 = vunpack.c.l.b16 %v124
    %v224 = vunpack.c.h.b16 %v124
    %v225 = vunpack.c.l.b16 %v125
    %v226 = vunpack.c.l.b16 %v126
    %v227 = vunpack.c.h.b16 %v126
    %v228 = vunpack.c.l.b16 %v127
    %v229 = vunpack.c.l.b16 %v128
    %v230 = vunpack.c.h.b16 %v128
    %v231 = vunpack.c.l.b16 %v129
    %v232 = vunpack.c.l.b16 %v130
    %v233 = vunpack.c.h.b16 %v130
    %v234 = vunpack.c.l.b16 %v131
    %v235 = vpack.c.b16 %v190, %v187
    %v236 = vpack.c.b16 %v191, %v188
    %v237 = vpack.c.b16 %v192, %v189
    %v238 = vpack.c.b16 %v196, %v193
    %v239 = vpack.c.b16 %v197, %v194
    %v240 = vpack.c.b16 %v198, %v195
    %v241 = vpack.c.b16 %v202, %v199
    %v242 = vpack.c.b16 %v203, %v200
    %v243 = vpack.c.b16 %v204, %v201
    %v244 = vpack.c.b16 %v208, %v205
    %v245 = vpack.c.b16 %v209, %v206
    %v246 = vpack.c.b16 %v210, %v207
    %v247 = vpack.c.b16 %v214, %v211
    %v248 = vpack.c.b16 %v215, %v212
    %v249 = vpack.c.b16 %v216, %v213
    %v250 = vpack.c.b16 %v220, %v217
    %v251 = vpack.c.b16 %v221, %v218
    %v252 = vpack.c.b16 %v222, %v219
    %v253 = vpack.c.b16 %v226, %v223
    %v254 = vpack.c.b16 %v227, %v224
    %v255 = vpack.c.b16 %v228, %v225
    %v256 = vpack.c.b16 %v232, %v229
    %v257 = vpack.c.b16 %v233, %v230
    %v258 = vpack.c.b16 %v234, %v231
    %283 = vmatprep.subr.bf16.mxu0 %v257
    %284 = vmatpush1.bf16.msra.mxu0 %v256
    %285 = vmatprep.subr.bf16.mxu0 %v254
    %286 = vmatpush1.bf16.msra.mxu0 %v253
    %287 = vmatprep.subr.bf16.mxu0 %v251
    %288 = vmatpush1.bf16.msra.mxu0 %v250
    %289 = vmatprep.subr.bf16.mxu0 %v248
    %290 = vmatpush1.bf16.msra.mxu0 %v247
    %291 = vmatprep.subr.bf16.mxu0 %v245
    %292 = vmatpush1.bf16.msra.mxu0 %v244
    %293 = vmatprep.subr.bf16.mxu0 %v242
    %294 = vmatpush1.bf16.msra.mxu0 %v241
    %295 = vmatprep.subr.bf16.mxu0 %v239
    %296 = vmatpush1.bf16.msra.mxu0 %v238
    %297 = vmatprep.subr.bf16.mxu0 %v236
    %298 = vmatpush1.bf16.msra.mxu0 %v235
    %299 = vmatprep.subr.bf16.mxu0 0
    %300 = vmatpush2.bf16.msra.mxu0 0
    %301 = vmatprep.subr.bf16.mxu0 0
    %302 = vmatpush2.bf16.msra.mxu0 0
    %303 = vmatprep.subr.bf16.mxu0 0
    %304 = vmatpush2.bf16.msra.mxu0 0
    %305 = vmatprep.subr.bf16.mxu0 0
    %306 = vmatpush2.bf16.msra.mxu0 0
    %307 = vmatprep.subr.bf16.mxu0 0
    %308 = vmatpush2.bf16.msra.mxu0 0
    %309 = vmatprep.subr.bf16.mxu0 0
    %310 = vmatpush2.bf16.msra.mxu0 0
    %311 = vmatprep.subr.bf16.mxu0 0
    %312 = vmatpush2.bf16.msra.mxu0 0
    %313 = vmatprep.subr.bf16.mxu0 0
    %314 = vmatpush2.bf16.msra.mxu0 0
    %315 = vmatprep.mubr.bf16.mxu0 0
    %316 = vmatmul.mubr.bf16.gmra.mxu0 %v153
    %v317 = vpop.f32.mrf.mxu0
    %v318 = vadd.f32 %v137, %v317
    %v319 = vpop.f32.mrf.mxu0
    %v320 = vadd.f32 %v141, %v319
    %v321 = vpop.f32.mrf.mxu0
    %v322 = vadd.f32 %v137, %v321
    %v323 = vpop.f32.mrf.mxu0
    %v324 = vadd.f32 %v141, %v323
    %325 = vdwg.mxu0
    %326 = vmatprep.subr.bf16.mxu0 0
    %327 = vmatpush1.bf16.msra.mxu0 %v258
    %328 = vmatprep.subr.bf16.mxu0 0
    %329 = vmatpush1.bf16.msra.mxu0 %v255
    %330 = vmatprep.subr.bf16.mxu0 0
    %331 = vmatpush1.bf16.msra.mxu0 %v252
    %332 = vmatprep.subr.bf16.mxu0 0
    %333 = vmatpush1.bf16.msra.mxu0 %v249
    %334 = vmatprep.subr.bf16.mxu0 0
    %335 = vmatpush1.bf16.msra.mxu0 %v246
    %336 = vmatprep.subr.bf16.mxu0 0
    %337 = vmatpush1.bf16.msra.mxu0 %v243
    %338 = vmatprep.subr.bf16.mxu0 0
    %339 = vmatpush1.bf16.msra.mxu0 %v240
    %340 = vmatprep.subr.bf16.mxu0 0
    %341 = vmatpush1.bf16.msra.mxu0 %v237
    %342 = vmatprep.subr.bf16.mxu0 0
    %343 = vmatpush2.bf16.msra.mxu0 0
    %344 = vmatprep.subr.bf16.mxu0 0
    %345 = vmatpush2.bf16.msra.mxu0 0
    %346 = vmatprep.subr.bf16.mxu0 0
    %347 = vmatpush2.bf16.msra.mxu0 0
    %348 = vmatprep.subr.bf16.mxu0 0
    %349 = vmatpush2.bf16.msra.mxu0 0
    %350 = vmatprep.subr.bf16.mxu0 0
    %351 = vmatpush2.bf16.msra.mxu0 0
    %352 = vmatprep.subr.bf16.mxu0 0
    %353 = vmatpush2.bf16.msra.mxu0 0
    %354 = vmatprep.subr.bf16.mxu0 0
    %355 = vmatpush2.bf16.msra.mxu0 0
    %356 = vmatprep.subr.bf16.mxu0 0
    %357 = vmatpush2.bf16.msra.mxu0 0
    %358 = vmatprep.mubr.bf16.mxu0 0
    %359 = vmatmul.mubr.bf16.gmra.mxu0 %v153
    %v360 = vpop.f32.mrf.mxu0
    %v361 = vadd.f32 %v145, %v360
    %v362 = vpop.f32.mrf.mxu0
    %v363 = vpop.f32.mrf.mxu0
    %v364 = vadd.f32 %v145, %v363
    %v365 = vpop.f32.mrf.mxu0
    %366 = vdwg.mxu0
    %v367 = vld [vmem:[#allocation7] sm:$0xff]
    %v368 = vld [vmem:[#allocation7 + $0x8] sm:$0xf]
    %v369 = vld [vmem:[#allocation7 + $0xc] sm:$0xff]
    %v370 = vld [vmem:[#allocation7 + $0x14] sm:$0xf]
    %v371 = vld [vmem:[#allocation7 + $0x18] sm:$0xff]
    %v372 = vld [vmem:[#allocation7 + $0x20] sm:$0xf]
    %v373 = vld [vmem:[#allocation7 + $0x24] sm:$0xff]
    %v374 = vld [vmem:[#allocation7 + $0x2c] sm:$0xf]
    %v375 = vld [vmem:[#allocation7 + $0x30] sm:$0xff]
    %v376 = vld [vmem:[#allocation7 + $0x38] sm:$0xf]
    %v377 = vld [vmem:[#allocation7 + $0x3c] sm:$0xff]
    %v378 = vld [vmem:[#allocation7 + $0x44] sm:$0xf]
    %v379 = vld [vmem:[#allocation7 + $0x48] sm:$0xff]
    %v380 = vld [vmem:[#allocation7 + $0x50] sm:$0xf]
    %v381 = vld [vmem:[#allocation7 + $0x54] sm:$0xff]
    %v382 = vld [vmem:[#allocation7 + $0x5c] sm:$0xf]
    %v383 = vld [vmem:[#allocation7 + $0x60] sm:$0xff]
    %v384 = vld [vmem:[#allocation7 + $0x68] sm:$0xf]
    %v385 = vld [vmem:[#allocation7 + $0x6c] sm:$0xff]
    %v386 = vld [vmem:[#allocation7 + $0x74] sm:$0xf]
    %v387 = vld [vmem:[#allocation7 + $0x78] sm:$0xff]
    %v388 = vld [vmem:[#allocation7 + $0x80] sm:$0xf]
    %v389 = vld [vmem:[#allocation7 + $0x84] sm:$0xff]
    %v390 = vld [vmem:[#allocation7 + $0x8c] sm:$0xf]
    %v391 = vld [vmem:[#allocation7 + $0x90] sm:$0xff]
    %v392 = vld [vmem:[#allocation7 + $0x98] sm:$0xf]
    %v393 = vld [vmem:[#allocation7 + $0x9c] sm:$0xff]
    %v394 = vld [vmem:[#allocation7 + $0xa4] sm:$0xf]
    %v395 = vld [vmem:[#allocation7 + $0xa8] sm:$0xff]
    %v396 = vld [vmem:[#allocation7 + $0xb0] sm:$0xf]
    %v397 = vld [vmem:[#allocation7 + $0xb4] sm:$0xff]
    %v398 = vld [vmem:[#allocation7 + $0xbc] sm:$0xf]
    %v399 = vld [vmem:[%s96] sm:$0x7]
    %v401 = vlaneseq
    %v402 = vshrl.u32 %v401, 7
    %v403 = vsub.s32 0, %v402
    %v404 = vrot.slane %v399, %v403
    %v405 = vlaneseq
    %v406 = vshrl.u32 %v405, 7
    %v407 = vsub.s32 1, %v406
    %v408 = vrot.slane %v399, %v407
    %v409 = vlaneseq
    %v410 = vshrl.u32 %v409, 7
    %v411 = vsub.s32 2, %v410
    %v412 = vrot.slane %v399, %v411
    %v448 = vunpack.c.l.b16 %v367
    %v449 = vunpack.c.h.b16 %v367
    %v450 = vunpack.c.l.b16 %v368
    %v451 = vunpack.c.l.b16 %v369
    %v452 = vunpack.c.h.b16 %v369
    %v453 = vunpack.c.l.b16 %v370
    %v454 = vunpack.c.l.b16 %v371
    %v455 = vunpack.c.h.b16 %v371
    %v456 = vunpack.c.l.b16 %v372
    %v457 = vunpack.c.l.b16 %v373
    %v458 = vunpack.c.h.b16 %v373
    %v459 = vunpack.c.l.b16 %v374
    %v460 = vunpack.c.l.b16 %v375
    %v461 = vunpack.c.h.b16 %v375
    %v462 = vunpack.c.l.b16 %v376
    %v463 = vunpack.c.l.b16 %v377
    %v464 = vunpack.c.h.b16 %v377
    %v465 = vunpack.c.l.b16 %v378
    %v466 = vunpack.c.l.b16 %v379
    %v467 = vunpack.c.h.b16 %v379
    %v468 = vunpack.c.l.b16 %v380
    %v469 = vunpack.c.l.b16 %v381
    %v470 = vunpack.c.h.b16 %v381
    %v471 = vunpack.c.l.b16 %v382
    %v472 = vunpack.c.l.b16 %v383
    %v473 = vunpack.c.h.b16 %v383
    %v474 = vunpack.c.l.b16 %v384
    %v475 = vunpack.c.l.b16 %v385
    %v476 = vunpack.c.h.b16 %v385
    %v477 = vunpack.c.l.b16 %v386
    %v478 = vunpack.c.l.b16 %v387
    %v479 = vunpack.c.h.b16 %v387
    %v480 = vunpack.c.l.b16 %v388
    %v481 = vunpack.c.l.b16 %v389
    %v482 = vunpack.c.h.b16 %v389
    %v483 = vunpack.c.l.b16 %v390
    %v484 = vunpack.c.l.b16 %v391
    %v485 = vunpack.c.h.b16 %v391
    %v486 = vunpack.c.l.b16 %v392
    %v487 = vunpack.c.l.b16 %v393
    %v488 = vunpack.c.h.b16 %v393
    %v489 = vunpack.c.l.b16 %v394
    %v490 = vunpack.c.l.b16 %v395
    %v491 = vunpack.c.h.b16 %v395
    %v492 = vunpack.c.l.b16 %v396
    %v493 = vunpack.c.l.b16 %v397
    %v494 = vunpack.c.h.b16 %v397
    %v495 = vunpack.c.l.b16 %v398
    %v496 = vpack.c.b16 %v451, %v448
    %v497 = vpack.c.b16 %v452, %v449
    %v498 = vpack.c.b16 %v453, %v450
    %v499 = vpack.c.b16 %v457, %v454
    %v500 = vpack.c.b16 %v458, %v455
    %v501 = vpack.c.b16 %v459, %v456
    %v502 = vpack.c.b16 %v463, %v460
    %v503 = vpack.c.b16 %v464, %v461
    %v504 = vpack.c.b16 %v465, %v462
    %v505 = vpack.c.b16 %v469, %v466
    %v506 = vpack.c.b16 %v470, %v467
    %v507 = vpack.c.b16 %v471, %v468
    %v508 = vpack.c.b16 %v475, %v472
    %v509 = vpack.c.b16 %v476, %v473
    %v510 = vpack.c.b16 %v477, %v474
    %v511 = vpack.c.b16 %v481, %v478
    %v512 = vpack.c.b16 %v482, %v479
    %v513 = vpack.c.b16 %v483, %v480
    %v514 = vpack.c.b16 %v487, %v484
    %v515 = vpack.c.b16 %v488, %v485
    %v516 = vpack.c.b16 %v489, %v486
    %v517 = vpack.c.b16 %v493, %v490
    %v518 = vpack.c.b16 %v494, %v491
    %v519 = vpack.c.b16 %v495, %v492
    %544 = vmatprep.subr.bf16.mxu0 %v518
    %545 = vmatpush1.bf16.msra.mxu0 %v517
    %546 = vmatprep.subr.bf16.mxu0 %v515
    %547 = vmatpush1.bf16.msra.mxu0 %v514
    %548 = vmatprep.subr.bf16.mxu0 %v512
    %549 = vmatpush1.bf16.msra.mxu0 %v511
    %550 = vmatprep.subr.bf16.mxu0 %v509
    %551 = vmatpush1.bf16.msra.mxu0 %v508
    %552 = vmatprep.subr.bf16.mxu0 %v506
    %553 = vmatpush1.bf16.msra.mxu0 %v505
    %554 = vmatprep.subr.bf16.mxu0 %v503
    %555 = vmatpush1.bf16.msra.mxu0 %v502
    %556 = vmatprep.subr.bf16.mxu0 %v500
    %557 = vmatpush1.bf16.msra.mxu0 %v499
    %558 = vmatprep.subr.bf16.mxu0 %v497
    %559 = vmatpush1.bf16.msra.mxu0 %v496
    %560 = vmatprep.subr.bf16.mxu0 0
    %561 = vmatpush2.bf16.msra.mxu0 0
    %562 = vmatprep.subr.bf16.mxu0 0
    %563 = vmatpush2.bf16.msra.mxu0 0
    %564 = vmatprep.subr.bf16.mxu0 0
    %565 = vmatpush2.bf16.msra.mxu0 0
    %566 = vmatprep.subr.bf16.mxu0 0
    %567 = vmatpush2.bf16.msra.mxu0 0
    %568 = vmatprep.subr.bf16.mxu0 0
    %569 = vmatpush2.bf16.msra.mxu0 0
    %570 = vmatprep.subr.bf16.mxu0 0
    %571 = vmatpush2.bf16.msra.mxu0 0
    %572 = vmatprep.subr.bf16.mxu0 0
    %573 = vmatpush2.bf16.msra.mxu0 0
    %574 = vmatprep.subr.bf16.mxu0 0
    %575 = vmatpush2.bf16.msra.mxu0 0
    %576 = vmatprep.mubr.bf16.mxu0 0
    %577 = vmatmul.mubr.bf16.gmra.mxu0 %v153
    %v578 = vpop.f32.mrf.mxu0
    %v579 = vadd.f32 %v404, %v578
    %v580 = vpop.f32.mrf.mxu0
    %v581 = vadd.f32 %v408, %v580
    %v582 = vpop.f32.mrf.mxu0
    %v583 = vadd.f32 %v404, %v582
    %v584 = vpop.f32.mrf.mxu0
    %v585 = vadd.f32 %v408, %v584
    %586 = vdwg.mxu0
    %587 = vmatprep.subr.bf16.mxu0 0
    %588 = vmatpush1.bf16.msra.mxu0 %v519
    %589 = vmatprep.subr.bf16.mxu0 0
    %590 = vmatpush1.bf16.msra.mxu0 %v516
    %591 = vmatprep.subr.bf16.mxu0 0
    %592 = vmatpush1.bf16.msra.mxu0 %v513
    %593 = vmatprep.subr.bf16.mxu0 0
    %594 = vmatpush1.bf16.msra.mxu0 %v510
    %595 = vmatprep.subr.bf16.mxu0 0
    %596 = vmatpush1.bf16.msra.mxu0 %v507
    %597 = vmatprep.subr.bf16.mxu0 0
    %598 = vmatpush1.bf16.msra.mxu0 %v504
    %599 = vmatprep.subr.bf16.mxu0 0
    %600 = vmatpush1.bf16.msra.mxu0 %v501
    %601 = vmatprep.subr.bf16.mxu0 0
    %602 = vmatpush1.bf16.msra.mxu0 %v498
    %603 = vmatprep.subr.bf16.mxu0 0
    %604 = vmatpush2.bf16.msra.mxu0 0
    %605 = vmatprep.subr.bf16.mxu0 0
    %606 = vmatpush2.bf16.msra.mxu0 0
    %607 = vmatprep.subr.bf16.mxu0 0
    %608 = vmatpush2.bf16.msra.mxu0 0
    %609 = vmatprep.subr.bf16.mxu0 0
    %610 = vmatpush2.bf16.msra.mxu0 0
    %611 = vmatprep.subr.bf16.mxu0 0
    %612 = vmatpush2.bf16.msra.mxu0 0
    %613 = vmatprep.subr.bf16.mxu0 0
    %614 = vmatpush2.bf16.msra.mxu0 0
    %615 = vmatprep.subr.bf16.mxu0 0
    %616 = vmatpush2.bf16.msra.mxu0 0
    %617 = vmatprep.subr.bf16.mxu0 0
    %618 = vmatpush2.bf16.msra.mxu0 0
    %619 = vmatprep.mubr.bf16.mxu0 0
    %620 = vmatmul.mubr.bf16.gmra.mxu0 %v153
    %v621 = vpop.f32.mrf.mxu0
    %v622 = vadd.f32 %v412, %v621
    %v623 = vpop.f32.mrf.mxu0
    %v624 = vpop.f32.mrf.mxu0
    %v625 = vadd.f32 %v412, %v624
    %v626 = vpop.f32.mrf.mxu0
    %627 = vdwg.mxu0
    %v628 = vmax.f32 %v579, 0.0
    %v629 = vmax.f32 %v581, 0.0
    %v630 = vmax.f32 %v622, 0.0
    %v631 = vmax.f32 %v583, 0.0
    %v632 = vmax.f32 %v585, 0.0
    %v633 = vmax.f32 %v625, 0.0
    %v634 = vmul.f32 %v318, %v628
    %v635 = vmul.f32 %v320, %v629
    %v636 = vmul.f32 %v361, %v630
    %v637 = vmul.f32 %v322, %v631
    %v638 = vmul.f32 %v324, %v632
    %v639 = vmul.f32 %v364, %v633
    %v640 = vpack.c.bf16 %v637, %v634
    %v641 = vpack.c.bf16 %v638, %v635
    %v642 = vpack.c.bf16 %v639, %v636
    %v643 = vld [vmem:[#allocation10] sm:$0xf]
    %v644 = vld [vmem:[#allocation10 + $0x4] sm:$0xf]
    %v645 = vld [vmem:[#allocation10 + $0x8] sm:$0xf]
    %v646 = vld [vmem:[#allocation10 + $0xc] sm:$0xf]
    %v647 = vld [vmem:[#allocation10 + $0x10] sm:$0xf]
    %v648 = vld [vmem:[#allocation10 + $0x14] sm:$0xf]
    %v649 = vld [vmem:[#allocation10 + $0x18] sm:$0xf]
    %v650 = vld [vmem:[#allocation10 + $0x1c] sm:$0xf]
    %v651 = vld [vmem:[#allocation10 + $0x20] sm:$0xf]
    %v652 = vld [vmem:[#allocation10 + $0x24] sm:$0xf]
    %v653 = vld [vmem:[#allocation10 + $0x28] sm:$0xf]
    %v654 = vld [vmem:[#allocation10 + $0x2c] sm:$0xf]
    %v655 = vld [vmem:[#allocation10 + $0x30] sm:$0xf]
    %v656 = vld [vmem:[#allocation10 + $0x34] sm:$0xf]
    %v657 = vld [vmem:[#allocation10 + $0x38] sm:$0xf]
    %v658 = vld [vmem:[#allocation10 + $0x3c] sm:$0xf]
    %v659 = vld [vmem:[#allocation10 + $0x40] sm:$0xf]
    %v660 = vld [vmem:[#allocation10 + $0x44] sm:$0xf]
    %v661 = vld [vmem:[#allocation10 + $0x48] sm:$0xf]
    %v662 = vld [vmem:[#allocation10 + $0x4c] sm:$0xf]
    %v663 = vld [vmem:[#allocation10 + $0x50] sm:$0xf]
    %v664 = vld [vmem:[#allocation10 + $0x54] sm:$0xf]
    %v665 = vld [vmem:[#allocation10 + $0x58] sm:$0xf]
    %v666 = vld [vmem:[#allocation10 + $0x5c] sm:$0xf]
    %v667 = vld [vmem:[#allocation10 + $0x60] sm:$0xf]
    %v668 = vld [vmem:[#allocation10 + $0x64] sm:$0xf]
    %v669 = vld [vmem:[#allocation10 + $0x68] sm:$0xf]
    %v670 = vld [vmem:[#allocation10 + $0x6c] sm:$0xf]
    %v671 = vld [vmem:[#allocation10 + $0x70] sm:$0xf]
    %v672 = vld [vmem:[#allocation10 + $0x74] sm:$0xf]
    %v673 = vld [vmem:[#allocation10 + $0x78] sm:$0xf]
    %v674 = vld [vmem:[#allocation10 + $0x7c] sm:$0xf]
    %v675 = vld [vmem:[#allocation10 + $0x80] sm:$0xf]
    %v676 = vld [vmem:[#allocation10 + $0x84] sm:$0xf]
    %v677 = vld [vmem:[#allocation10 + $0x88] sm:$0xf]
    %v678 = vld [vmem:[#allocation10 + $0x8c] sm:$0xf]
    %v679 = vld [vmem:[#allocation10 + $0x90] sm:$0xf]
    %v680 = vld [vmem:[#allocation10 + $0x94] sm:$0xf]
    %v681 = vld [vmem:[#allocation10 + $0x98] sm:$0xf]
    %v682 = vld [vmem:[#allocation10 + $0x9c] sm:$0xf]
    %v683 = vld [vmem:[#allocation10 + $0xa0] sm:$0xf]
    %v684 = vld [vmem:[#allocation10 + $0xa4] sm:$0xf]
    %v685 = vld [vmem:[#allocation10 + $0xa8] sm:$0xf]
    %v686 = vld [vmem:[#allocation10 + $0xac] sm:$0xf]
    %v687 = vld [vmem:[#allocation10 + $0xb0] sm:$0xf]
    %v688 = vld [vmem:[#allocation10 + $0xb4] sm:$0xf]
    %v689 = vld [vmem:[#allocation10 + $0xb8] sm:$0xf]
    %v690 = vld [vmem:[#allocation10 + $0xbc] sm:$0xf]
    %v691 = vld [vmem:[%s6] sm:$0x1]
    %v693 = vlaneseq
    %v694 = vshrl.u32 %v693, 7
    %v695 = vsub.s32 0, %v694
    %v696 = vrot.slane %v691, %v695
    %v746 = vunpack.c.l.b16 %v643
    %v747 = vunpack.c.l.b16 %v644
    %v748 = vunpack.c.l.b16 %v645
    %v749 = vunpack.c.l.b16 %v646
    %v750 = vunpack.c.l.b16 %v647
    %v751 = vunpack.c.l.b16 %v648
    %v752 = vunpack.c.l.b16 %v649
    %v753 = vunpack.c.l.b16 %v650
    %v754 = vunpack.c.l.b16 %v651
    %v755 = vunpack.c.l.b16 %v652
    %v756 = vunpack.c.l.b16 %v653
    %v757 = vunpack.c.l.b16 %v654
    %v758 = vunpack.c.l.b16 %v655
    %v759 = vunpack.c.l.b16 %v656
    %v760 = vunpack.c.l.b16 %v657
    %v761 = vunpack.c.l.b16 %v658
    %v762 = vunpack.c.l.b16 %v659
    %v763 = vunpack.c.l.b16 %v660
    %v764 = vunpack.c.l.b16 %v661
    %v765 = vunpack.c.l.b16 %v662
    %v766 = vunpack.c.l.b16 %v663
    %v767 = vunpack.c.l.b16 %v664
    %v768 = vunpack.c.l.b16 %v665
    %v769 = vunpack.c.l.b16 %v666
    %v770 = vunpack.c.l.b16 %v667
    %v771 = vunpack.c.l.b16 %v668
    %v772 = vunpack.c.l.b16 %v669
    %v773 = vunpack.c.l.b16 %v670
    %v774 = vunpack.c.l.b16 %v671
    %v775 = vunpack.c.l.b16 %v672
    %v776 = vunpack.c.l.b16 %v673
    %v777 = vunpack.c.l.b16 %v674
    %v778 = vunpack.c.l.b16 %v675
    %v779 = vunpack.c.l.b16 %v676
    %v780 = vunpack.c.l.b16 %v677
    %v781 = vunpack.c.l.b16 %v678
    %v782 = vunpack.c.l.b16 %v679
    %v783 = vunpack.c.l.b16 %v680
    %v784 = vunpack.c.l.b16 %v681
    %v785 = vunpack.c.l.b16 %v682
    %v786 = vunpack.c.l.b16 %v683
    %v787 = vunpack.c.l.b16 %v684
    %v788 = vunpack.c.l.b16 %v685
    %v789 = vunpack.c.l.b16 %v686
    %v790 = vunpack.c.l.b16 %v687
    %v791 = vunpack.c.l.b16 %v688
    %v792 = vunpack.c.l.b16 %v689
    %v793 = vunpack.c.l.b16 %v690
    %v794 = vpack.c.b16 %v747, %v746
    %v795 = vpack.c.b16 %v749, %v748
    %v796 = vpack.c.b16 %v751, %v750
    %v797 = vpack.c.b16 %v753, %v752
    %v798 = vpack.c.b16 %v755, %v754
    %v799 = vpack.c.b16 %v757, %v756
    %v800 = vpack.c.b16 %v759, %v758
    %v801 = vpack.c.b16 %v761, %v760
    %v802 = vpack.c.b16 %v763, %v762
    %v803 = vpack.c.b16 %v765, %v764
    %v804 = vpack.c.b16 %v767, %v766
    %v805 = vpack.c.b16 %v769, %v768
    %v806 = vpack.c.b16 %v771, %v770
    %v807 = vpack.c.b16 %v773, %v772
    %v808 = vpack.c.b16 %v775, %v774
    %v809 = vpack.c.b16 %v777, %v776
    %v810 = vpack.c.b16 %v779, %v778
    %v811 = vpack.c.b16 %v781, %v780
    %v812 = vpack.c.b16 %v783, %v782
    %v813 = vpack.c.b16 %v785, %v784
    %v814 = vpack.c.b16 %v787, %v786
    %v815 = vpack.c.b16 %v789, %v788
    %v816 = vpack.c.b16 %v791, %v790
    %v817 = vpack.c.b16 %v793, %v792
    %842 = vmatprep.subr.bf16.mxu0 0
    %843 = vmatpush1.bf16.msra.mxu0 %v801
    %844 = vmatprep.subr.bf16.mxu0 0
    %845 = vmatpush1.bf16.msra.mxu0 %v800
    %846 = vmatprep.subr.bf16.mxu0 0
    %847 = vmatpush1.bf16.msra.mxu0 %v799
    %848 = vmatprep.subr.bf16.mxu0 0
    %849 = vmatpush1.bf16.msra.mxu0 %v798
    %850 = vmatprep.subr.bf16.mxu0 0
    %851 = vmatpush1.bf16.msra.mxu0 %v797
    %852 = vmatprep.subr.bf16.mxu0 0
    %853 = vmatpush1.bf16.msra.mxu0 %v796
    %854 = vmatprep.subr.bf16.mxu0 0
    %855 = vmatpush1.bf16.msra.mxu0 %v795
    %856 = vmatprep.subr.bf16.mxu0 0
    %857 = vmatpush1.bf16.msra.mxu0 %v794
    %858 = vmatprep.subr.bf16.mxu0 0
    %859 = vmatpush2.bf16.msra.mxu0 %v809
    %860 = vmatprep.subr.bf16.mxu0 0
    %861 = vmatpush2.bf16.msra.mxu0 %v808
    %862 = vmatprep.subr.bf16.mxu0 0
    %863 = vmatpush2.bf16.msra.mxu0 %v807
    %864 = vmatprep.subr.bf16.mxu0 0
    %865 = vmatpush2.bf16.msra.mxu0 %v806
    %866 = vmatprep.subr.bf16.mxu0 0
    %867 = vmatpush2.bf16.msra.mxu0 %v805
    %868 = vmatprep.subr.bf16.mxu0 0
    %869 = vmatpush2.bf16.msra.mxu0 %v804
    %870 = vmatprep.subr.bf16.mxu0 0
    %871 = vmatpush2.bf16.msra.mxu0 %v803
    %872 = vmatprep.subr.bf16.mxu0 0
    %873 = vmatpush2.bf16.msra.mxu0 %v802
    %874 = vmatprep.mubr.bf16.mxu0 %v641
    %875 = vmatmul.mubr.bf16.gmra.mxu0 %v640
    %v876 = vpop.f32.mrf.mxu0
    %v877 = vadd.f32 %v696, %v876
    %v878 = vpop.f32.mrf.mxu0
    %v879 = vpop.f32.mrf.mxu0
    %v880 = vadd.f32 %v696, %v879
    %v881 = vpop.f32.mrf.mxu0
    %882 = vdwg.mxu0
    %883 = vmatprep.subr.bf16.mxu0 0
    %884 = vmatpush1.bf16.msra.mxu0 %v817
    %885 = vmatprep.subr.bf16.mxu0 0
    %886 = vmatpush1.bf16.msra.mxu0 %v816
    %887 = vmatprep.subr.bf16.mxu0 0
    %888 = vmatpush1.bf16.msra.mxu0 %v815
    %889 = vmatprep.subr.bf16.mxu0 0
    %890 = vmatpush1.bf16.msra.mxu0 %v814
    %891 = vmatprep.subr.bf16.mxu0 0
    %892 = vmatpush1.bf16.msra.mxu0 %v813
    %893 = vmatprep.subr.bf16.mxu0 0
    %894 = vmatpush1.bf16.msra.mxu0 %v812
    %895 = vmatprep.subr.bf16.mxu0 0
    %896 = vmatpush1.bf16.msra.mxu0 %v811
    %897 = vmatprep.subr.bf16.mxu0 0
    %898 = vmatpush1.bf16.msra.mxu0 %v810
    %899 = vmatprep.subr.bf16.mxu0 0
    %900 = vmatpush2.bf16.msra.mxu0 0
    %901 = vmatprep.subr.bf16.mxu0 0
    %902 = vmatpush2.bf16.msra.mxu0 0
    %903 = vmatprep.subr.bf16.mxu0 0
    %904 = vmatpush2.bf16.msra.mxu0 0
    %905 = vmatprep.subr.bf16.mxu0 0
    %906 = vmatpush2.bf16.msra.mxu0 0
    %907 = vmatprep.subr.bf16.mxu0 0
    %908 = vmatpush2.bf16.msra.mxu0 0
    %909 = vmatprep.subr.bf16.mxu0 0
    %910 = vmatpush2.bf16.msra.mxu0 0
    %911 = vmatprep.subr.bf16.mxu0 0
    %912 = vmatpush2.bf16.msra.mxu0 0
    %913 = vmatprep.subr.bf16.mxu0 0
    %914 = vmatpush2.bf16.msra.mxu0 0
    %915 = vmatprep.mubr.bf16.mxu0 0
    %916 = vmatmul.mubr.bf16.gmra.mxu0 %v642
    %v917 = vpop.f32.mrf.mxu0
    %v918 = vadd.f32 %v877, %v917
    %v919 = vpop.f32.mrf.mxu0
    %v920 = vpop.f32.mrf.mxu0
    %v921 = vadd.f32 %v880, %v920
    %v922 = vpop.f32.mrf.mxu0
    %923 = vdwg.mxu0
    %924 = vst [vmem:[#allocation11] sm:$0xff] %v918
    %925 = vst [vmem:[#allocation11 + $0x8] sm:$0xff] %v921
    // Predicated region
    $region50: #{tpu_custom_call.1} parent=1 // pred_check
      _
    $region51: #{tpu_custom_call.1} parent=1 // pred_check_branch
      %927 = sbr.rel (0) target = $region53
    $region52: #{tpu_custom_call.1} parent=1 // pred_region
      %s929 = ssub.s32 256, 256
      %930 = vsyncadd [#allocation4], %s929
      %s931 = sshll.u32 [#allocation11], 4
      %s932 = int_to_ptr.vmem [resolvable:$true] %s931
      %937 = dma.vmem_to_hbm [thread:$0]  %s932, 256, %s7, [#allocation4], 128, 128, 8
    $region53: #{tpu_custom_call.1} parent=1 // pred_fallthru
      _
    // Predicated region
    $region54: #{tpu_custom_call.1} parent=1 // pred_check
      _
    $region55: #{tpu_custom_call.1} parent=1 // pred_check_branch
      %939 = sbr.rel (0) target = $region57
    $region56: #{tpu_custom_call.1} parent=1 // pred_region
      %940 = dma.done [#allocation4], 256
    $region57: #{tpu_custom_call.1} parent=1 // pred_fallthru
      _
    %941 = vsyncpa [#allocation3], 1
    %942 = vsyncpa [#allocation6], 1
    %943 = vsyncpa [#allocation9], 1
    %944 = vsyncpa [#allocation4], 1

</llo_original>
